<compile_context>
chip_gen: v6e
topology: v6e:2x2x1
jax: 0.10.0
libtpu: 0.0.40
codegen_flags: <defaults>
</compile_context>

<pallas_src>
import jax
import jax.numpy as jnp
from jax.experimental import pallas as pl
from jax.experimental.pallas import tpu as pltpu


def scse_kernel(x_ref, g_ref, wsp_ref, chn_ref, spa_ref):
    # x_ref: (1, tHW, C)   g_ref: (1, 1, C)   wsp_ref: (1, C)
    # chn_ref, spa_ref: (1, tHW, C)
    x = x_ref[0].astype(jnp.float32)                      # (tHW, C)

    # channel SE: precomputed gate, broadcast over pixels
    g = g_ref[0].astype(jnp.float32)                      # (1, C)
    chn_ref[0] = (x * g).astype(chn_ref.dtype)

    # spatial SE: 1x1 conv C->1 (no bias) == per-pixel dot with wsp row.
    # VPU multiply + lane (XLU) reduce — keeps the MXU out of this mem-bound kernel.
    w = wsp_ref[...].astype(jnp.float32)                  # (1, C)
    s = jax.nn.sigmoid(jnp.sum(x * w, axis=-1, keepdims=True))   # (tHW, 1)
    spa_ref[0] = (x * s).astype(spa_ref.dtype)


def _pick_row_tile(hw, target=512):
    """Largest multiple-of-8 divisor of hw that is <= target (or hw itself)."""
    if hw <= target:
        return hw
    t = target - (target % 8)
    while t >= 8:
        if hw % t == 0:
            return t
        t -= 8
    return hw


def scse_forward_nhwc(x_nhwc, w1, b1, w2, b2, wsp):
    """Preferred (layout-friendly) entry point.

    x_nhwc: (N, H, W, C).  Returns (chn_se, spa_se), each (N, H, W, C), dtype of x.
    """
    N, H, W, C = x_nhwc.shape
    HW = H * W
    x = x_nhwc.reshape(N, HW, C)

    # ---- channel-SE gate in plain JAX (tiny; always f32) ----
    pooled = jnp.mean(x.astype(jnp.float32), axis=1)                      # (N, C)
    h = jnp.maximum(pooled @ w1.astype(jnp.float32)
                    + b1.astype(jnp.float32)[0], 0.0)                     # (N, C//r)
    g = jax.nn.sigmoid(h @ w2.astype(jnp.float32)
                       + b2.astype(jnp.float32)[0])                       # (N, C)
    g3 = g.reshape(N, 1, C)                                               # (N, 1, C)

    wsp_row = wsp.reshape(1, C).astype(jnp.float32)                       # (1, C)

    thw = _pick_row_tile(HW)
    grid = (N, HW // thw)

    chn, spa = pl.pallas_call(
        scse_kernel,
        out_shape=(jax.ShapeDtypeStruct((N, HW, C), x.dtype),
                   jax.ShapeDtypeStruct((N, HW, C), x.dtype)),
        grid=grid,
        in_specs=[
            pl.BlockSpec((1, thw, C), lambda b, t: (b, t, 0)),   # x tile
            pl.BlockSpec((1, 1, C), lambda b, t: (b, 0, 0)),     # gate for this batch
            pl.BlockSpec((1, C), lambda b, t: (0, 0)),           # spatial conv weight
        ],
        out_specs=(
            pl.BlockSpec((1, thw, C), lambda b, t: (b, t, 0)),
            pl.BlockSpec((1, thw, C), lambda b, t: (b, t, 0)),
        ),
        compiler_params=pltpu.CompilerParams(
            dimension_semantics=("parallel", "parallel")),
    )(x, g3, wsp_row)

    return chn.reshape(N, H, W, C), spa.reshape(N, H, W, C)


def scse_forward(x_nchw, w1, b1, w2, b2, wsp):
    """NCHW boundary matching the PyTorch module (mode='concat')."""
    N, C, H, W = x_nchw.shape
    x_nhwc = jnp.transpose(x_nchw, (0, 2, 3, 1))
    chn, spa = scse_forward_nhwc(x_nhwc, w1, b1, w2, b2, wsp)
    # channel-order merge [chn_se | spa_se] folds into the single output transpose
    return jnp.concatenate([jnp.transpose(chn, (0, 3, 1, 2)),
                            jnp.transpose(spa, (0, 3, 1, 2))], axis=1)


def scse_reference(x, w1, b1, w2, b2, wsp):
    # plain-JAX reference mirroring the PyTorch forward (NCHW, mode='concat')
    pooled = jnp.mean(x, axis=(2, 3))                         # (N, C)
    h = jnp.maximum(pooled @ w1 + b1[0], 0.0)                 # (N, C//r)
    g = jax.nn.sigmoid(h @ w2 + b2[0])                        # (N, C)
    chn = x * g[:, :, None, None]
    s = jax.nn.sigmoid(jnp.einsum('nchw,c->nhw', x, wsp[:, 0]))
    spa = x * s[:, None, :, :]
    return jnp.concatenate([chn, spa], axis=1)


if __name__ == "__main__":
    N, C, H, W = 2, 32, 16, 16
    reduction = 16
    mid = C // reduction

    key = jax.random.PRNGKey(0)
    kx, k1, k2, k3, k4, k5 = jax.random.split(key, 6)

    x = jax.random.normal(kx, (N, C, H, W), dtype=jnp.float32)
    w1 = jax.random.normal(k1, (C, mid), dtype=jnp.float32) * 0.1
    b1 = jax.random.normal(k2, (1, mid), dtype=jnp.float32) * 0.1
    w2 = jax.random.normal(k3, (mid, C), dtype=jnp.float32) * 0.1
    b2 = jax.random.normal(k4, (1, C), dtype=jnp.float32) * 0.1
    wsp = jax.random.normal(k5, (C, 1), dtype=jnp.float32) * 0.1

    ref = scse_reference(x, w1, b1, w2, b2, wsp)

    # f32 path — exact check vs reference
    out = scse_forward(x, w1, b1, w2, b2, wsp)
    out = jax.block_until_ready(out)
    assert out.shape == (N, 2 * C, H, W), out.shape
    assert jnp.allclose(out, ref, atol=1e-5, rtol=1e-5), "f32 mismatch vs reference"

    # bf16 I/O path (recommended in production: halves HBM traffic; math stays f32)
    out_bf16 = scse_forward(x.astype(jnp.bfloat16), w1, b1, w2, b2, wsp)
    out_bf16 = jax.block_until_ready(out_bf16)
    assert out_bf16.dtype == jnp.bfloat16
    assert jnp.allclose(out_bf16.astype(jnp.float32), ref, atol=5e-2, rtol=5e-2), \
        "bf16 mismatch vs reference"

    print("KERNEL_OK")
</pallas_src>

<mosaic_0001>
module attributes {stable_mosaic.version = 11 : i64} {
  func.func @scse_kernel(%arg0: i32, %arg1: i32, %arg2: memref<1x256x32xf32, #tpu.memory_space<vmem>>, %arg3: memref<1x1x32xf32, #tpu.memory_space<vmem>>, %arg4: memref<1x32xf32, #tpu.memory_space<vmem>>, %arg5: memref<1x256x32xf32, #tpu.memory_space<vmem>>, %arg6: memref<1x256x32xf32, #tpu.memory_space<vmem>>) attributes {dimension_semantics = [#tpu.dimension_semantics<parallel>, #tpu.dimension_semantics<parallel>], iteration_bounds = array<i64: 2, 1>, scalar_prefetch = 0 : i64, scratch_operands = 0 : i64, tpu.core_type = #tpu.core_type<tc>, window_params = [{transform_indices = @transform_0, window_bounds = array<i64: 1, 256, 32>}, {transform_indices = @transform_1, window_bounds = array<i64: 1, 1, 32>}, {pipeline_mode = #tpu.pipeline_mode<synchronous>, transform_indices = @transform_2, window_bounds = array<i64: 1, 32>}, {transform_indices = @transform_3, window_bounds = array<i64: 1, 256, 32>}, {transform_indices = @transform_4, window_bounds = array<i64: 1, 256, 32>}]} {
    %c0 = arith.constant 0 : index
    %c0_0 = arith.constant 0 : index
    %c0_1 = arith.constant 0 : index
    %0 = vector.load %arg2[%c0, %c0_0, %c0_1] : memref<1x256x32xf32, #tpu.memory_space<vmem>>, vector<1x256x32xf32>
    %1 = vector.shape_cast %0 : vector<1x256x32xf32> to vector<256x32xf32>
    %c0_2 = arith.constant 0 : index
    %c0_3 = arith.constant 0 : index
    %c0_4 = arith.constant 0 : index
    %2 = vector.load %arg3[%c0_2, %c0_3, %c0_4] : memref<1x1x32xf32, #tpu.memory_space<vmem>>, vector<1x1x32xf32>
    %3 = vector.shape_cast %2 : vector<1x1x32xf32> to vector<1x32xf32>
    %4 = vector.broadcast %3 : vector<1x32xf32> to vector<256x32xf32>
    %5 = arith.mulf %1, %4 : vector<256x32xf32>
    %c0_5 = arith.constant 0 : index
    %c0_6 = arith.constant 0 : index
    %c0_7 = arith.constant 0 : index
    %6 = vector.load %arg5[%c0_5, %c0_6, %c0_7] : memref<1x256x32xf32, #tpu.memory_space<vmem>>, vector<1x256x32xf32>
    %7 = vector.shape_cast %6 : vector<1x256x32xf32> to vector<256x32xf32>
    %8 = vector.shape_cast %5 : vector<256x32xf32> to vector<1x256x32xf32>
    tpu.vector_store %arg5[%c0_5, %c0_6, %c0_7], %8 {strides = array<i32>} : memref<1x256x32xf32, #tpu.memory_space<vmem>>, vector<1x256x32xf32>,
    %c0_8 = arith.constant 0 : index
    %c0_9 = arith.constant 0 : index
    %9 = vector.load %arg4[%c0_8, %c0_9] : memref<1x32xf32, #tpu.memory_space<vmem>>, vector<1x32xf32>
    %10 = vector.broadcast %9 : vector<1x32xf32> to vector<256x32xf32>
    %11 = arith.mulf %1, %10 : vector<256x32xf32>
    %cst = arith.constant dense<0.000000e+00> : vector<256xf32>
    %12 = vector.multi_reduction <add>, %11, %cst [1] : vector<256x32xf32> to vector<256xf32>
    %13 = vector.shape_cast %12 : vector<256xf32> to vector<256x1xf32>
    %14 = arith.negf %13 : vector<256x1xf32>
    %15 = math.exp %14 : vector<256x1xf32>
    %cst_10 = arith.constant 1.000000e+00 : f32
    %16 = vector.broadcast %cst_10 : f32 to vector<256x1xf32>
    %17 = arith.addf %16, %15 : vector<256x1xf32>
    %18 = arith.divf %16, %17 : vector<256x1xf32>
    %19 = vector.broadcast %18 : vector<256x1xf32> to vector<256x32xf32>
    %20 = arith.mulf %1, %19 : vector<256x32xf32>
    %c0_11 = arith.constant 0 : index
    %c0_12 = arith.constant 0 : index
    %c0_13 = arith.constant 0 : index
    %21 = vector.load %arg6[%c0_11, %c0_12, %c0_13] : memref<1x256x32xf32, #tpu.memory_space<vmem>>, vector<1x256x32xf32>
    %22 = vector.shape_cast %21 : vector<1x256x32xf32> to vector<256x32xf32>
    %23 = vector.shape_cast %20 : vector<256x32xf32> to vector<1x256x32xf32>
    tpu.vector_store %arg6[%c0_11, %c0_12, %c0_13], %23 {strides = array<i32>} : memref<1x256x32xf32, #tpu.memory_space<vmem>>, vector<1x256x32xf32>,
    return
  }
  func.func @transform_0(%arg0: i32, %arg1: i32) -> (i32, i32, i32) {
    %c0_i32 = arith.constant 0 : i32
    %c0_i32_0 = arith.constant 0 : i32
    return %arg0, %arg1, %c0_i32 : i32, i32, i32
  }
  func.func @transform_1(%arg0: i32, %arg1: i32) -> (i32, i32, i32) {
    %c0_i32 = arith.constant 0 : i32
    %c0_i32_0 = arith.constant 0 : i32
    %c0_i32_1 = arith.constant 0 : i32
    return %arg0, %c0_i32, %c0_i32_0 : i32, i32, i32
  }
  func.func @transform_2(%arg0: i32, %arg1: i32) -> (i32, i32) {
    %c0_i32 = arith.constant 0 : i32
    %c0_i32_0 = arith.constant 0 : i32
    %c0_i32_1 = arith.constant 0 : i32
    return %c0_i32, %c0_i32_0 : i32, i32
  }
  func.func @transform_3(%arg0: i32, %arg1: i32) -> (i32, i32, i32) {
    %c0_i32 = arith.constant 0 : i32
    %c0_i32_0 = arith.constant 0 : i32
    return %arg0, %arg1, %c0_i32 : i32, i32, i32
  }
  func.func @transform_4(%arg0: i32, %arg1: i32) -> (i32, i32, i32) {
    %c0_i32 = arith.constant 0 : i32
    %c0_i32_0 = arith.constant 0 : i32
    return %arg0, %arg1, %c0_i32 : i32, i32, i32
  }
}

</mosaic_0001>

<llo_original>
// kernel: tpu_custom_call.1
$region0: #{tpu_custom_call.1}
  #allocation0 [shape = 'u32[]', space=smem, size = 0x4, offset = 0x4, fixed_abs, tag = 'smem constant byte address 0x4 - core index']
  #allocation1 [shape = 'u32[144,128]{1,0:T(1,128)}', space=vmem, size = 0x12000, scoped, tag = 'internal scratch']
  %s0 = inlined_call_operand.vmem [shape: f32[2,256,32], index: 0, kind: input, shape index: {}]
  %s1 = inlined_call_operand.vmem [shape: f32[2,1,32], index: 1, kind: input, shape index: {}]
  %s2 = inlined_call_operand.vmem [shape: f32[1,32], index: 2, kind: input, shape index: {}]
  %s3 = inlined_call_operand.vmem [shape: f32[2,256,32], index: 3, kind: output, shape index: {0}]
  %s4 = inlined_call_operand.vmem [shape: f32[2,256,32], index: 4, kind: output, shape index: {1}]
  %5 = xla_tuple %s3, %s4
  %s6 = sld [smem:[#allocation0]]
  $region53: #{tpu_custom_call.1} parent=0
    _
  %s8 = ssub.s32 1, %s6
  %s9 = scalar_select 0, %s8, %s6
  loop: start=0, step=1, limit=4
  $region2: #{tpu_custom_call.1} parent=0 // loop_pre_header
    _
  $region3: #{tpu_custom_call.1} parent=0 // loop_header
    %s11 = sphi 0, %s15
    %p12 = scmp.ge.s32.totalorder %s11, 4
    %s18 = sphi 0, %s30
    %s19 = sphi 0, %s26
    %s20 = sphi 0, %s18
    %s21 = sphi 0, %s19
    %s22 = sphi 0, %s20
    %s23 = sphi 0, %s21
    %s35 = sphi 0, %s37
    %s38 = sphi 0, %s35
    %s39 = sphi 0, %s38
    %s55 = sphi 0, %s39
    %s61 = sphi 0, %s63
    %s64 = sphi 0, %s61
    %s65 = sphi 0, %s64
    %s81 = sphi 0, %s65
    %s85 = sphi 0, %s85
    %s87 = sphi 0, %s85
    %s88 = sphi 0, %s87
    %s102 = sphi 0, %s88
    %s110 = sphi 0, %s112
    %s113 = sphi 0, %s110
    %s114 = sphi 0, %s113
    %s130 = sphi 0, %s114
    %s138 = sphi 0, %s140
    %s141 = sphi 0, %s138
    %s142 = sphi 0, %s141
    %s158 = sphi 0, %s142
  $region4: #{tpu_custom_call.1} parent=0 // loop_header_branch
    %14 = sbr.rel (%p12) target = $region8
  $region5: #{tpu_custom_call.1} parent=0 // loop_body
    %s16 = ssub.s32 %s11, 1
    %s17 = ssub.s32 %s11, 2
    %s24 = sadd.s32 1, %s19
    %p25 = scmp.ge.s32.totalorder %s24, 1
    %s26 = scalar_select %p25, 0, %s24
    %s27 = sadd.s32 1, %s18
    %s28 = scalar_select %p25, %s27, %s18
    %p29 = scmp.ge.s32.totalorder %s28, 2
    %s30 = scalar_select %p29, 0, %s28
    %s31 = ssub.s32 %s18, %s30
    %s32 = ssub.s32 %s19, %s26
    %s33 = sor.u32 %s31, %s32
    %p34 = scmp.eq.s32.totalorder %s33, 0
    %s36 = sadd.s32 %s35, 1
    %s37 = scalar_select %p34, %s35, %s36
    %p40 = pneg %p34
    %p41 = scmp.eq.s32.totalorder %s11, 1
    %p42 = por %p40, %p41
    %p43 = scmp.ne.s32.totalorder %s35, %s38
    %p44 = scmp.eq.s32.totalorder %s11, 0
    %p45 = por %p43, %p44
    %p46 = scmp.ne.s32.totalorder %s35, %s38
    %p47 = scmp.eq.s32.totalorder %s16, 1
    %p48 = por %p46, %p47
    %p49 = scmp.ne.s32.totalorder %s38, %s39
    %p50 = scmp.eq.s32.totalorder %s16, 0
    %p51 = por %p49, %p50
    %p52 = scmp.ne.s32.totalorder %s38, %s39
    %p53 = scmp.eq.s32.totalorder %s17, 1
    %p54 = por %p52, %p53
    %p56 = scmp.ne.s32.totalorder %s39, %s55
    %p57 = scmp.eq.s32.totalorder %s17, 0
    %p58 = por %p56, %p57
    %s59 = ssub.s32 %s18, %s30
    %p60 = scmp.eq.s32.totalorder %s59, 0
    %s62 = sadd.s32 %s61, 1
    %s63 = scalar_select %p60, %s61, %s62
    %p66 = pneg %p60
    %p67 = scmp.eq.s32.totalorder %s11, 1
    %p68 = por %p66, %p67
    %p69 = scmp.ne.s32.totalorder %s61, %s64
    %p70 = scmp.eq.s32.totalorder %s11, 0
    %p71 = por %p69, %p70
    %p72 = scmp.ne.s32.totalorder %s61, %s64
    %p73 = scmp.eq.s32.totalorder %s16, 1
    %p74 = por %p72, %p73
    %p75 = scmp.ne.s32.totalorder %s64, %s65
    %p76 = scmp.eq.s32.totalorder %s16, 0
    %p77 = por %p75, %p76
    %p78 = scmp.ne.s32.totalorder %s64, %s65
    %p79 = scmp.eq.s32.totalorder %s17, 1
    %p80 = por %p78, %p79
    %p82 = scmp.ne.s32.totalorder %s65, %s81
    %p83 = scmp.eq.s32.totalorder %s17, 0
    %p84 = por %p82, %p83
    %s86 = sadd.s32 %s85, 1
    %p89 = scmp.eq.s32.totalorder %s11, 1
    %p90 = scmp.ne.s32.totalorder %s85, %s87
    %p91 = scmp.eq.s32.totalorder %s11, 0
    %p92 = por %p90, %p91
    %p93 = scmp.ne.s32.totalorder %s85, %s87
    %p94 = scmp.eq.s32.totalorder %s16, 1
    %p95 = por %p93, %p94
    %p96 = scmp.ne.s32.totalorder %s87, %s88
    %p97 = scmp.eq.s32.totalorder %s16, 0
    %p98 = por %p96, %p97
    %p99 = scmp.ne.s32.totalorder %s87, %s88
    %p100 = scmp.eq.s32.totalorder %s17, 1
    %p101 = por %p99, %p100
    %p103 = scmp.ne.s32.totalorder %s88, %s102
    %p104 = scmp.eq.s32.totalorder %s17, 0
    %p105 = por %p103, %p104
    %s106 = ssub.s32 %s18, %s30
    %s107 = ssub.s32 %s19, %s26
    %s108 = sor.u32 %s106, %s107
    %p109 = scmp.eq.s32.totalorder %s108, 0
    %s111 = sadd.s32 %s110, 1
    %s112 = scalar_select %p109, %s110, %s111
    %p115 = pneg %p109
    %p116 = scmp.eq.s32.totalorder %s11, 1
    %p117 = por %p115, %p116
    %p118 = scmp.ne.s32.totalorder %s110, %s113
    %p119 = scmp.eq.s32.totalorder %s11, 0
    %p120 = por %p118, %p119
    %p121 = scmp.ne.s32.totalorder %s110, %s113
    %p122 = scmp.eq.s32.totalorder %s16, 1
    %p123 = por %p121, %p122
    %p124 = scmp.ne.s32.totalorder %s113, %s114
    %p125 = scmp.eq.s32.totalorder %s16, 0
    %p126 = por %p124, %p125
    %p127 = scmp.ne.s32.totalorder %s113, %s114
    %p128 = scmp.eq.s32.totalorder %s17, 1
    %p129 = por %p127, %p128
    %p131 = scmp.ne.s32.totalorder %s114, %s130
    %p132 = scmp.eq.s32.totalorder %s17, 0
    %p133 = por %p131, %p132
    %s134 = ssub.s32 %s18, %s30
    %s135 = ssub.s32 %s19, %s26
    %s136 = sor.u32 %s134, %s135
    %p137 = scmp.eq.s32.totalorder %s136, 0
    %s139 = sadd.s32 %s138, 1
    %s140 = scalar_select %p137, %s138, %s139
    %p143 = pneg %p137
    %p144 = scmp.eq.s32.totalorder %s11, 1
    %p145 = por %p143, %p144
    %p146 = scmp.ne.s32.totalorder %s138, %s141
    %p147 = scmp.eq.s32.totalorder %s11, 0
    %p148 = por %p146, %p147
    %p149 = scmp.ne.s32.totalorder %s138, %s141
    %p150 = scmp.eq.s32.totalorder %s16, 1
    %p151 = por %p149, %p150
    %p152 = scmp.ne.s32.totalorder %s141, %s142
    %p153 = scmp.eq.s32.totalorder %s16, 0
    %p154 = por %p152, %p153
    %p155 = scmp.ne.s32.totalorder %s141, %s142
    %p156 = scmp.eq.s32.totalorder %s17, 1
    %p157 = por %p155, %p156
    %p159 = scmp.ne.s32.totalorder %s142, %s158
    %p160 = scmp.eq.s32.totalorder %s17, 0
    %p161 = por %p159, %p160
    %p162 = scmp.le.s32.totalorder 1, %s11
    %p163 = scmp.lt.s32.totalorder %s11, 3
    %p164 = pnand %p162, %p163
    %p165 = pneg %p164
    // Predicated region
    $region9: #{tpu_custom_call.1} parent=5 // pred_check
      _
    $region10: #{tpu_custom_call.1} parent=5 // pred_check_branch
      %167 = sbr.rel (%p164) target = $region12
    $region11: #{tpu_custom_call.1} parent=5 // pred_region
      %s168 = ssub.s32 %s11, 1
      // Predicated region
      $region13: #{tpu_custom_call.1} parent=11 // pred_check
        %p169 = pneg %p98
      $region14: #{tpu_custom_call.1} parent=11 // pred_check_branch
        %171 = sbr.rel (%p169) target = $region16
      $region15: #{tpu_custom_call.1} parent=11 // pred_region
        _
      $region16: #{tpu_custom_call.1} parent=11 // pred_fallthru
        _
    $region12: #{tpu_custom_call.1} parent=5 // pred_fallthru
      _
    %p172 = scmp.lt.s32.totalorder %s11, 2
    // Predicated region
    $region17: #{tpu_custom_call.1} parent=5 // pred_check
      %p173 = pneg %p172
    $region18: #{tpu_custom_call.1} parent=5 // pred_check_branch
      %175 = sbr.rel (%p173) target = $region20
    $region19: #{tpu_custom_call.1} parent=5 // pred_region
      // Predicated region
      $region21: #{tpu_custom_call.1} parent=19 // pred_check
        %p176 = pneg %p45
      $region22: #{tpu_custom_call.1} parent=19 // pred_check_branch
        %178 = sbr.rel (%p176) target = $region24
      $region23: #{tpu_custom_call.1} parent=19 // pred_region
        %s179 = smul.u32 32, %s19
        %p180 = scmp.lt.s32.totalorder %s18, 1
        %s181 = scalar_select %p180, %s18, 1
        %p182 = scmp.lt.s32.totalorder %s179, 31
        %s183 = scalar_select %p182, %s179, 31
        %s184 = smul.addr %s181, 32
        %s185 = sadd.s32 %s183, %s184
        %s186 = smul.addr %s185, 8
        %s187 = scalar_lea.vmem %s0, %s186
        %s188 = smul.u32 32, %s19
      $region24: #{tpu_custom_call.1} parent=19 // pred_fallthru
        _
      // Predicated region
      $region25: #{tpu_custom_call.1} parent=19 // pred_check
        %p189 = pneg %p71
      $region26: #{tpu_custom_call.1} parent=19 // pred_check_branch
        %191 = sbr.rel (%p189) target = $region28
      $region27: #{tpu_custom_call.1} parent=19 // pred_region
        %p192 = scmp.lt.s32.totalorder %s18, 1
        %s193 = scalar_select %p192, %s18, 1
        %s194 = scalar_lea.vmem %s1, %s193
      $region28: #{tpu_custom_call.1} parent=19 // pred_fallthru
        _
    $region20: #{tpu_custom_call.1} parent=5 // pred_fallthru
      _
    %p195 = scmp.le.s32.totalorder 1, %s11
    %p196 = scmp.lt.s32.totalorder %s11, 3
    %p197 = pnand %p195, %p196
    %p198 = pneg %p197
    // Predicated region
    $region29: #{tpu_custom_call.1} parent=5 // pred_check
      _
    $region30: #{tpu_custom_call.1} parent=5 // pred_check_branch
      %200 = sbr.rel (%p197) target = $region32
    $region31: #{tpu_custom_call.1} parent=5 // pred_region
      %s201 = ssub.s32 %s11, 1
      %s202 = smul.u32 32, %s21
      %p203 = scmp.lt.s32.totalorder %s20, 1
      %s204 = scalar_select %p203, %s20, 1
      %p205 = scmp.lt.s32.totalorder %s202, 31
      %s206 = scalar_select %p205, %s202, 31
      %s207 = smul.addr %s204, 32
      %s208 = sadd.s32 %s206, %s207
      %s209 = smul.addr %s208, 8
      %s210 = scalar_lea.vmem %s0, %s209
      %p211 = pneg %p51
      %p212 = pneg %p48
      %p213 = scmp.lt.s32.totalorder %s20, 1
      %s214 = scalar_select %p213, %s20, 1
      %s215 = scalar_lea.vmem %s1, %s214
      %p216 = pneg %p77
      %p217 = pneg %p74
      %p218 = pneg %p98
      %p219 = pneg %p95
      %p220 = pneg %p126
      %p221 = pneg %p123
      %s222 = smul.u32 32, %s21
      %p223 = scmp.lt.s32.totalorder %s20, 1
      %s224 = scalar_select %p223, %s20, 1
      %p225 = scmp.lt.s32.totalorder %s222, 31
      %s226 = scalar_select %p225, %s222, 31
      %s227 = smul.addr %s224, 32
      %s228 = sadd.s32 %s226, %s227
      %s229 = smul.addr %s228, 8
      %s230 = scalar_lea.vmem %s3, %s229
      %p231 = pneg %p154
      %p232 = pneg %p151
      %s233 = smul.u32 32, %s21
      %p234 = scmp.lt.s32.totalorder %s20, 1
      %s235 = scalar_select %p234, %s20, 1
      %p236 = scmp.lt.s32.totalorder %s233, 31
      %s237 = scalar_select %p236, %s233, 31
      %s238 = smul.addr %s235, 32
      %s239 = sadd.s32 %s237, %s238
      %s240 = smul.addr %s239, 8
      %s241 = scalar_lea.vmem %s4, %s240
      %s242 = smul.u32 32, %s21
      %p243 = scmp.lt.s32.totalorder %s20, 1
      %s244 = scalar_select %p243, %s20, 1
      %p245 = scmp.lt.s32.totalorder %s242, 31
      %s246 = scalar_select %p245, %s242, 31
      %s247 = smul.addr %s244, 32
      %s248 = sadd.s32 %s246, %s247
      %s249 = smul.addr %s248, 8
      %s250 = scalar_lea.vmem %s0, %s249
      %s251 = smul.u32 32, %s21
      %p252 = scmp.lt.s32.totalorder %s20, 1
      %s253 = scalar_select %p252, %s20, 1
      %s254 = scalar_lea.vmem %s1, %s253
      %s255 = smul.u32 32, %s21
      %p256 = scmp.lt.s32.totalorder %s20, 1
      %s257 = scalar_select %p256, %s20, 1
      %p258 = scmp.lt.s32.totalorder %s255, 31
      %s259 = scalar_select %p258, %s255, 31
      %s260 = smul.addr %s257, 32
      %s261 = sadd.s32 %s259, %s260
      %s262 = smul.addr %s261, 8
      %s263 = scalar_lea.vmem %s3, %s262
      %s264 = smul.u32 32, %s21
      %s265 = smul.u32 32, %s21
      %p266 = scmp.lt.s32.totalorder %s20, 1
      %s267 = scalar_select %p266, %s20, 1
      %p268 = scmp.lt.s32.totalorder %s265, 31
      %s269 = scalar_select %p268, %s265, 31
      %s270 = smul.addr %s267, 32
      %s271 = sadd.s32 %s269, %s270
      %s272 = smul.addr %s271, 8
      %s273 = scalar_lea.vmem %s4, %s272
      %s274 = smul.u32 32, %s21
      %v275 = vld [vmem:[%s250] sm:$0xff]
      %v276 = vld [vmem:[%s250 + $0x8] sm:$0xff]
      %v277 = vld [vmem:[%s250 + $0x10] sm:$0xff]
      %v278 = vld [vmem:[%s250 + $0x18] sm:$0xff]
      %v279 = vld [vmem:[%s250 + $0x20] sm:$0xff]
      %v280 = vld [vmem:[%s250 + $0x28] sm:$0xff]
      %v281 = vld [vmem:[%s250 + $0x30] sm:$0xff]
      %v282 = vld [vmem:[%s250 + $0x38] sm:$0xff]
      %v283 = vld [vmem:[%s250 + $0x40] sm:$0xff]
      %v284 = vld [vmem:[%s250 + $0x48] sm:$0xff]
      %v285 = vld [vmem:[%s250 + $0x50] sm:$0xff]
      %v286 = vld [vmem:[%s250 + $0x58] sm:$0xff]
      %v287 = vld [vmem:[%s250 + $0x60] sm:$0xff]
      %v288 = vld [vmem:[%s250 + $0x68] sm:$0xff]
      %v289 = vld [vmem:[%s250 + $0x70] sm:$0xff]
      %v290 = vld [vmem:[%s250 + $0x78] sm:$0xff]
      %v291 = vld [vmem:[%s250 + $0x80] sm:$0xff]
      %v292 = vld [vmem:[%s250 + $0x88] sm:$0xff]
      %v293 = vld [vmem:[%s250 + $0x90] sm:$0xff]
      %v294 = vld [vmem:[%s250 + $0x98] sm:$0xff]
      %v295 = vld [vmem:[%s250 + $0xa0] sm:$0xff]
      %v296 = vld [vmem:[%s250 + $0xa8] sm:$0xff]
      %v297 = vld [vmem:[%s250 + $0xb0] sm:$0xff]
      %v298 = vld [vmem:[%s250 + $0xb8] sm:$0xff]
      %v299 = vld [vmem:[%s250 + $0xc0] sm:$0xff]
      %v300 = vld [vmem:[%s250 + $0xc8] sm:$0xff]
      %v301 = vld [vmem:[%s250 + $0xd0] sm:$0xff]
      %v302 = vld [vmem:[%s250 + $0xd8] sm:$0xff]
      %v303 = vld [vmem:[%s250 + $0xe0] sm:$0xff]
      %v304 = vld [vmem:[%s250 + $0xe8] sm:$0xff]
      %v305 = vld [vmem:[%s250 + $0xf0] sm:$0xff]
      %v306 = vld [vmem:[%s250 + $0xf8] sm:$0xff]
      %v307 = vld [vmem:[%s254] sm:$0x1]
      %v309 = vlaneseq
      %v310 = vshrl.u32 %v309, 7
      %v311 = vsub.s32 0, %v310
      %v312 = vrot.slane %v307, %v311
      %v314 = vmul.f32 %v275, %v312
      %v315 = vmul.f32 %v276, %v312
      %v316 = vmul.f32 %v277, %v312
      %v317 = vmul.f32 %v278, %v312
      %v318 = vmul.f32 %v279, %v312
      %v319 = vmul.f32 %v280, %v312
      %v320 = vmul.f32 %v281, %v312
      %v321 = vmul.f32 %v282, %v312
      %v322 = vmul.f32 %v283, %v312
      %v323 = vmul.f32 %v284, %v312
      %v324 = vmul.f32 %v285, %v312
      %v325 = vmul.f32 %v286, %v312
      %v326 = vmul.f32 %v287, %v312
      %v327 = vmul.f32 %v288, %v312
      %v328 = vmul.f32 %v289, %v312
      %v329 = vmul.f32 %v290, %v312
      %v330 = vmul.f32 %v291, %v312
      %v331 = vmul.f32 %v292, %v312
      %v332 = vmul.f32 %v293, %v312
      %v333 = vmul.f32 %v294, %v312
      %v334 = vmul.f32 %v295, %v312
      %v335 = vmul.f32 %v296, %v312
      %v336 = vmul.f32 %v297, %v312
      %v337 = vmul.f32 %v298, %v312
      %v338 = vmul.f32 %v299, %v312
      %v339 = vmul.f32 %v300, %v312
      %v340 = vmul.f32 %v301, %v312
      %v341 = vmul.f32 %v302, %v312
      %v342 = vmul.f32 %v303, %v312
      %v343 = vmul.f32 %v304, %v312
      %v344 = vmul.f32 %v305, %v312
      %v345 = vmul.f32 %v306, %v312
      %vm346 = vcmask 261120
      %347 = vst.msk [vmem:[%s263] sm:$0xff] %vm346, %v314
      %348 = vst.msk [vmem:[%s263 + $0x8] sm:$0xff] %vm346, %v315
      %349 = vst.msk [vmem:[%s263 + $0x10] sm:$0xff] %vm346, %v316
      %350 = vst.msk [vmem:[%s263 + $0x18] sm:$0xff] %vm346, %v317
      %351 = vst.msk [vmem:[%s263 + $0x20] sm:$0xff] %vm346, %v318
      %352 = vst.msk [vmem:[%s263 + $0x28] sm:$0xff] %vm346, %v319
      %353 = vst.msk [vmem:[%s263 + $0x30] sm:$0xff] %vm346, %v320
      %354 = vst.msk [vmem:[%s263 + $0x38] sm:$0xff] %vm346, %v321
      %355 = vst.msk [vmem:[%s263 + $0x40] sm:$0xff] %vm346, %v322
      %356 = vst.msk [vmem:[%s263 + $0x48] sm:$0xff] %vm346, %v323
      %357 = vst.msk [vmem:[%s263 + $0x50] sm:$0xff] %vm346, %v324
      %358 = vst.msk [vmem:[%s263 + $0x58] sm:$0xff] %vm346, %v325
      %359 = vst.msk [vmem:[%s263 + $0x60] sm:$0xff] %vm346, %v326
      %360 = vst.msk [vmem:[%s263 + $0x68] sm:$0xff] %vm346, %v327
      %361 = vst.msk [vmem:[%s263 + $0x70] sm:$0xff] %vm346, %v328
      %362 = vst.msk [vmem:[%s263 + $0x78] sm:$0xff] %vm346, %v329
      %363 = vst.msk [vmem:[%s263 + $0x80] sm:$0xff] %vm346, %v330
      %364 = vst.msk [vmem:[%s263 + $0x88] sm:$0xff] %vm346, %v331
      %365 = vst.msk [vmem:[%s263 + $0x90] sm:$0xff] %vm346, %v332
      %366 = vst.msk [vmem:[%s263 + $0x98] sm:$0xff] %vm346, %v333
      %367 = vst.msk [vmem:[%s263 + $0xa0] sm:$0xff] %vm346, %v334
      %368 = vst.msk [vmem:[%s263 + $0xa8] sm:$0xff] %vm346, %v335
      %369 = vst.msk [vmem:[%s263 + $0xb0] sm:$0xff] %vm346, %v336
      %370 = vst.msk [vmem:[%s263 + $0xb8] sm:$0xff] %vm346, %v337
      %371 = vst.msk [vmem:[%s263 + $0xc0] sm:$0xff] %vm346, %v338
      %372 = vst.msk [vmem:[%s263 + $0xc8] sm:$0xff] %vm346, %v339
      %373 = vst.msk [vmem:[%s263 + $0xd0] sm:$0xff] %vm346, %v340
      %374 = vst.msk [vmem:[%s263 + $0xd8] sm:$0xff] %vm346, %v341
      %375 = vst.msk [vmem:[%s263 + $0xe0] sm:$0xff] %vm346, %v342
      %376 = vst.msk [vmem:[%s263 + $0xe8] sm:$0xff] %vm346, %v343
      %377 = vst.msk [vmem:[%s263 + $0xf0] sm:$0xff] %vm346, %v344
      %378 = vst.msk [vmem:[%s263 + $0xf8] sm:$0xff] %vm346, %v345
      %v379 = vld [vmem:[%s2] sm:$0x1]
      %v381 = vlaneseq
      %v382 = vshrl.u32 %v381, 7
      %v383 = vsub.s32 0, %v382
      %v384 = vrot.slane %v379, %v383
      %v386 = vmul.f32 %v275, %v384
      %v387 = vmul.f32 %v276, %v384
      %v388 = vmul.f32 %v277, %v384
      %v389 = vmul.f32 %v278, %v384
      %v390 = vmul.f32 %v279, %v384
      %v391 = vmul.f32 %v280, %v384
      %v392 = vmul.f32 %v281, %v384
      %v393 = vmul.f32 %v282, %v384
      %v394 = vmul.f32 %v283, %v384
      %v395 = vmul.f32 %v284, %v384
      %v396 = vmul.f32 %v285, %v384
      %v397 = vmul.f32 %v286, %v384
      %v398 = vmul.f32 %v287, %v384
      %v399 = vmul.f32 %v288, %v384
      %v400 = vmul.f32 %v289, %v384
      %v401 = vmul.f32 %v290, %v384
      %v402 = vmul.f32 %v291, %v384
      %v403 = vmul.f32 %v292, %v384
      %v404 = vmul.f32 %v293, %v384
      %v405 = vmul.f32 %v294, %v384
      %v406 = vmul.f32 %v295, %v384
      %v407 = vmul.f32 %v296, %v384
      %v408 = vmul.f32 %v297, %v384
      %v409 = vmul.f32 %v298, %v384
      %v410 = vmul.f32 %v299, %v384
      %v411 = vmul.f32 %v300, %v384
      %v412 = vmul.f32 %v301, %v384
      %v413 = vmul.f32 %v302, %v384
      %v414 = vmul.f32 %v303, %v384
      %v415 = vmul.f32 %v304, %v384
      %v416 = vmul.f32 %v305, %v384
      %v417 = vmul.f32 %v306, %v384
      %v418 = vsel %vm346, %v386, 0.0
      %419 = vadd.xlane.f32.xlu0 %v418
      %v420 = vpop.xlane.xlu0 %419
      %v421 = vsel %vm346, %v387, 0.0
      %422 = vadd.xlane.f32.xlu0 %v421
      %v423 = vpop.xlane.xlu0 %422
      %v424 = vsel %vm346, %v388, 0.0
      %425 = vadd.xlane.f32.xlu0 %v424
      %v426 = vpop.xlane.xlu0 %425
      %v427 = vsel %vm346, %v389, 0.0
      %428 = vadd.xlane.f32.xlu0 %v427
      %v429 = vpop.xlane.xlu0 %428
      %v430 = vsel %vm346, %v390, 0.0
      %431 = vadd.xlane.f32.xlu0 %v430
      %v432 = vpop.xlane.xlu0 %431
      %v433 = vsel %vm346, %v391, 0.0
      %434 = vadd.xlane.f32.xlu0 %v433
      %v435 = vpop.xlane.xlu0 %434
      %v436 = vsel %vm346, %v392, 0.0
      %437 = vadd.xlane.f32.xlu0 %v436
      %v438 = vpop.xlane.xlu0 %437
      %v439 = vsel %vm346, %v393, 0.0
      %440 = vadd.xlane.f32.xlu0 %v439
      %v441 = vpop.xlane.xlu0 %440
      %v442 = vsel %vm346, %v394, 0.0
      %443 = vadd.xlane.f32.xlu0 %v442
      %v444 = vpop.xlane.xlu0 %443
      %v445 = vsel %vm346, %v395, 0.0
      %446 = vadd.xlane.f32.xlu0 %v445
      %v447 = vpop.xlane.xlu0 %446
      %v448 = vsel %vm346, %v396, 0.0
      %449 = vadd.xlane.f32.xlu0 %v448
      %v450 = vpop.xlane.xlu0 %449
      %v451 = vsel %vm346, %v397, 0.0
      %452 = vadd.xlane.f32.xlu0 %v451
      %v453 = vpop.xlane.xlu0 %452
      %v454 = vsel %vm346, %v398, 0.0
      %455 = vadd.xlane.f32.xlu0 %v454
      %v456 = vpop.xlane.xlu0 %455
      %v457 = vsel %vm346, %v399, 0.0
      %458 = vadd.xlane.f32.xlu0 %v457
      %v459 = vpop.xlane.xlu0 %458
      %v460 = vsel %vm346, %v400, 0.0
      %461 = vadd.xlane.f32.xlu0 %v460
      %v462 = vpop.xlane.xlu0 %461
      %v463 = vsel %vm346, %v401, 0.0
      %464 = vadd.xlane.f32.xlu0 %v463
      %v465 = vpop.xlane.xlu0 %464
      %v466 = vsel %vm346, %v402, 0.0
      %467 = vadd.xlane.f32.xlu0 %v466
      %v468 = vpop.xlane.xlu0 %467
      %v469 = vsel %vm346, %v403, 0.0
      %470 = vadd.xlane.f32.xlu0 %v469
      %v471 = vpop.xlane.xlu0 %470
      %v472 = vsel %vm346, %v404, 0.0
      %473 = vadd.xlane.f32.xlu0 %v472
      %v474 = vpop.xlane.xlu0 %473
      %v475 = vsel %vm346, %v405, 0.0
      %476 = vadd.xlane.f32.xlu0 %v475
      %v477 = vpop.xlane.xlu0 %476
      %v478 = vsel %vm346, %v406, 0.0
      %479 = vadd.xlane.f32.xlu0 %v478
      %v480 = vpop.xlane.xlu0 %479
      %v481 = vsel %vm346, %v407, 0.0
      %482 = vadd.xlane.f32.xlu0 %v481
      %v483 = vpop.xlane.xlu0 %482
      %v484 = vsel %vm346, %v408, 0.0
      %485 = vadd.xlane.f32.xlu0 %v484
      %v486 = vpop.xlane.xlu0 %485
      %v487 = vsel %vm346, %v409, 0.0
      %488 = vadd.xlane.f32.xlu0 %v487
      %v489 = vpop.xlane.xlu0 %488
      %v490 = vsel %vm346, %v410, 0.0
      %491 = vadd.xlane.f32.xlu0 %v490
      %v492 = vpop.xlane.xlu0 %491
      %v493 = vsel %vm346, %v411, 0.0
      %494 = vadd.xlane.f32.xlu0 %v493
      %v495 = vpop.xlane.xlu0 %494
      %v496 = vsel %vm346, %v412, 0.0
      %497 = vadd.xlane.f32.xlu0 %v496
      %v498 = vpop.xlane.xlu0 %497
      %v499 = vsel %vm346, %v413, 0.0
      %500 = vadd.xlane.f32.xlu0 %v499
      %v501 = vpop.xlane.xlu0 %500
      %v502 = vsel %vm346, %v414, 0.0
      %503 = vadd.xlane.f32.xlu0 %v502
      %v504 = vpop.xlane.xlu0 %503
      %v505 = vsel %vm346, %v415, 0.0
      %506 = vadd.xlane.f32.xlu0 %v505
      %v507 = vpop.xlane.xlu0 %506
      %v508 = vsel %vm346, %v416, 0.0
      %509 = vadd.xlane.f32.xlu0 %v508
      %v510 = vpop.xlane.xlu0 %509
      %v511 = vsel %vm346, %v417, 0.0
      %512 = vadd.xlane.f32.xlu0 %v511
      %v513 = vpop.xlane.xlu0 %512
      %v514 = vxor.u32 %v420, 2147483648
      %v515 = vxor.u32 %v423, 2147483648
      %v516 = vxor.u32 %v426, 2147483648
      %v517 = vxor.u32 %v429, 2147483648
      %v518 = vxor.u32 %v432, 2147483648
      %v519 = vxor.u32 %v435, 2147483648
      %v520 = vxor.u32 %v438, 2147483648
      %v521 = vxor.u32 %v441, 2147483648
      %v522 = vxor.u32 %v444, 2147483648
      %v523 = vxor.u32 %v447, 2147483648
      %v524 = vxor.u32 %v450, 2147483648
      %v525 = vxor.u32 %v453, 2147483648
      %v526 = vxor.u32 %v456, 2147483648
      %v527 = vxor.u32 %v459, 2147483648
      %v528 = vxor.u32 %v462, 2147483648
      %v529 = vxor.u32 %v465, 2147483648
      %v530 = vxor.u32 %v468, 2147483648
      %v531 = vxor.u32 %v471, 2147483648
      %v532 = vxor.u32 %v474, 2147483648
      %v533 = vxor.u32 %v477, 2147483648
      %v534 = vxor.u32 %v480, 2147483648
      %v535 = vxor.u32 %v483, 2147483648
      %v536 = vxor.u32 %v486, 2147483648
      %v537 = vxor.u32 %v489, 2147483648
      %v538 = vxor.u32 %v492, 2147483648
      %v539 = vxor.u32 %v495, 2147483648
      %v540 = vxor.u32 %v498, 2147483648
      %v541 = vxor.u32 %v501, 2147483648
      %v542 = vxor.u32 %v504, 2147483648
      %v543 = vxor.u32 %v507, 2147483648
      %v544 = vxor.u32 %v510, 2147483648
      %v545 = vxor.u32 %v513, 2147483648
      %v546 = vmul.f32 %v514, 1.442695
      %v547 = vpow.pop %v546
      %v548 = vmul.f32 %v515, 1.442695
      %v549 = vpow.pop %v548
      %v550 = vmul.f32 %v516, 1.442695
      %v551 = vpow.pop %v550
      %v552 = vmul.f32 %v517, 1.442695
      %v553 = vpow.pop %v552
      %v554 = vmul.f32 %v518, 1.442695
      %v555 = vpow.pop %v554
      %v556 = vmul.f32 %v519, 1.442695
      %v557 = vpow.pop %v556
      %v558 = vmul.f32 %v520, 1.442695
      %v559 = vpow.pop %v558
      %v560 = vmul.f32 %v521, 1.442695
      %v561 = vpow.pop %v560
      %v562 = vmul.f32 %v522, 1.442695
      %v563 = vpow.pop %v562
      %v564 = vmul.f32 %v523, 1.442695
      %v565 = vpow.pop %v564
      %v566 = vmul.f32 %v524, 1.442695
      %v567 = vpow.pop %v566
      %v568 = vmul.f32 %v525, 1.442695
      %v569 = vpow.pop %v568
      %v570 = vmul.f32 %v526, 1.442695
      %v571 = vpow.pop %v570
      %v572 = vmul.f32 %v527, 1.442695
      %v573 = vpow.pop %v572
      %v574 = vmul.f32 %v528, 1.442695
      %v575 = vpow.pop %v574
      %v576 = vmul.f32 %v529, 1.442695
      %v577 = vpow.pop %v576
      %v578 = vmul.f32 %v530, 1.442695
      %v579 = vpow.pop %v578
      %v580 = vmul.f32 %v531, 1.442695
      %v581 = vpow.pop %v580
      %v582 = vmul.f32 %v532, 1.442695
      %v583 = vpow.pop %v582
      %v584 = vmul.f32 %v533, 1.442695
      %v585 = vpow.pop %v584
      %v586 = vmul.f32 %v534, 1.442695
      %v587 = vpow.pop %v586
      %v588 = vmul.f32 %v535, 1.442695
      %v589 = vpow.pop %v588
      %v590 = vmul.f32 %v536, 1.442695
      %v591 = vpow.pop %v590
      %v592 = vmul.f32 %v537, 1.442695
      %v593 = vpow.pop %v592
      %v594 = vmul.f32 %v538, 1.442695
      %v595 = vpow.pop %v594
      %v596 = vmul.f32 %v539, 1.442695
      %v597 = vpow.pop %v596
      %v598 = vmul.f32 %v540, 1.442695
      %v599 = vpow.pop %v598
      %v600 = vmul.f32 %v541, 1.442695
      %v601 = vpow.pop %v600
      %v602 = vmul.f32 %v542, 1.442695
      %v603 = vpow.pop %v602
      %v604 = vmul.f32 %v543, 1.442695
      %v605 = vpow.pop %v604
      %v606 = vmul.f32 %v544, 1.442695
      %v607 = vpow.pop %v606
      %v608 = vmul.f32 %v545, 1.442695
      %v609 = vpow.pop %v608
      %v610 = vadd.f32 %v547, 1.0
      %v611 = vadd.f32 %v549, 1.0
      %v612 = vadd.f32 %v551, 1.0
      %v613 = vadd.f32 %v553, 1.0
      %v614 = vadd.f32 %v555, 1.0
      %v615 = vadd.f32 %v557, 1.0
      %v616 = vadd.f32 %v559, 1.0
      %v617 = vadd.f32 %v561, 1.0
      %v618 = vadd.f32 %v563, 1.0
      %v619 = vadd.f32 %v565, 1.0
      %v620 = vadd.f32 %v567, 1.0
      %v621 = vadd.f32 %v569, 1.0
      %v622 = vadd.f32 %v571, 1.0
      %v623 = vadd.f32 %v573, 1.0
      %v624 = vadd.f32 %v575, 1.0
      %v625 = vadd.f32 %v577, 1.0
      %v626 = vadd.f32 %v579, 1.0
      %v627 = vadd.f32 %v581, 1.0
      %v628 = vadd.f32 %v583, 1.0
      %v629 = vadd.f32 %v585, 1.0
      %v630 = vadd.f32 %v587, 1.0
      %v631 = vadd.f32 %v589, 1.0
      %v632 = vadd.f32 %v591, 1.0
      %v633 = vadd.f32 %v593, 1.0
      %v634 = vadd.f32 %v595, 1.0
      %v635 = vadd.f32 %v597, 1.0
      %v636 = vadd.f32 %v599, 1.0
      %v637 = vadd.f32 %v601, 1.0
      %v638 = vadd.f32 %v603, 1.0
      %v639 = vadd.f32 %v605, 1.0
      %v640 = vadd.f32 %v607, 1.0
      %v641 = vadd.f32 %v609, 1.0
      %v642 = vrcp.pop %v610
      %v643 = vmul.f32 1.0, %v642
      %v644 = vrcp.pop %v611
      %v645 = vmul.f32 1.0, %v644
      %v646 = vrcp.pop %v612
      %v647 = vmul.f32 1.0, %v646
      %v648 = vrcp.pop %v613
      %v649 = vmul.f32 1.0, %v648
      %v650 = vrcp.pop %v614
      %v651 = vmul.f32 1.0, %v650
      %v652 = vrcp.pop %v615
      %v653 = vmul.f32 1.0, %v652
      %v654 = vrcp.pop %v616
      %v655 = vmul.f32 1.0, %v654
      %v656 = vrcp.pop %v617
      %v657 = vmul.f32 1.0, %v656
      %v658 = vrcp.pop %v618
      %v659 = vmul.f32 1.0, %v658
      %v660 = vrcp.pop %v619
      %v661 = vmul.f32 1.0, %v660
      %v662 = vrcp.pop %v620
      %v663 = vmul.f32 1.0, %v662
      %v664 = vrcp.pop %v621
      %v665 = vmul.f32 1.0, %v664
      %v666 = vrcp.pop %v622
      %v667 = vmul.f32 1.0, %v666
      %v668 = vrcp.pop %v623
      %v669 = vmul.f32 1.0, %v668
      %v670 = vrcp.pop %v624
      %v671 = vmul.f32 1.0, %v670
      %v672 = vrcp.pop %v625
      %v673 = vmul.f32 1.0, %v672
      %v674 = vrcp.pop %v626
      %v675 = vmul.f32 1.0, %v674
      %v676 = vrcp.pop %v627
      %v677 = vmul.f32 1.0, %v676
      %v678 = vrcp.pop %v628
      %v679 = vmul.f32 1.0, %v678
      %v680 = vrcp.pop %v629
      %v681 = vmul.f32 1.0, %v680
      %v682 = vrcp.pop %v630
      %v683 = vmul.f32 1.0, %v682
      %v684 = vrcp.pop %v631
      %v685 = vmul.f32 1.0, %v684
      %v686 = vrcp.pop %v632
      %v687 = vmul.f32 1.0, %v686
      %v688 = vrcp.pop %v633
      %v689 = vmul.f32 1.0, %v688
      %v690 = vrcp.pop %v634
      %v691 = vmul.f32 1.0, %v690
      %v692 = vrcp.pop %v635
      %v693 = vmul.f32 1.0, %v692
      %v694 = vrcp.pop %v636
      %v695 = vmul.f32 1.0, %v694
      %v696 = vrcp.pop %v637
      %v697 = vmul.f32 1.0, %v696
      %v698 = vrcp.pop %v638
      %v699 = vmul.f32 1.0, %v698
      %v700 = vrcp.pop %v639
      %v701 = vmul.f32 1.0, %v700
      %v702 = vrcp.pop %v640
      %v703 = vmul.f32 1.0, %v702
      %v704 = vrcp.pop %v641
      %v705 = vmul.f32 1.0, %v704
      %v706 = vmul.f32 %v275, %v643
      %v707 = vmul.f32 %v276, %v645
      %v708 = vmul.f32 %v277, %v647
      %v709 = vmul.f32 %v278, %v649
      %v710 = vmul.f32 %v279, %v651
      %v711 = vmul.f32 %v280, %v653
      %v712 = vmul.f32 %v281, %v655
      %v713 = vmul.f32 %v282, %v657
      %v714 = vmul.f32 %v283, %v659
      %v715 = vmul.f32 %v284, %v661
      %v716 = vmul.f32 %v285, %v663
      %v717 = vmul.f32 %v286, %v665
      %v718 = vmul.f32 %v287, %v667
      %v719 = vmul.f32 %v288, %v669
      %v720 = vmul.f32 %v289, %v671
      %v721 = vmul.f32 %v290, %v673
      %v722 = vmul.f32 %v291, %v675
      %v723 = vmul.f32 %v292, %v677
      %v724 = vmul.f32 %v293, %v679
      %v725 = vmul.f32 %v294, %v681
      %v726 = vmul.f32 %v295, %v683
      %v727 = vmul.f32 %v296, %v685
      %v728 = vmul.f32 %v297, %v687
      %v729 = vmul.f32 %v298, %v689
      %v730 = vmul.f32 %v299, %v691
      %v731 = vmul.f32 %v300, %v693
      %v732 = vmul.f32 %v301, %v695
      %v733 = vmul.f32 %v302, %v697
      %v734 = vmul.f32 %v303, %v699
      %v735 = vmul.f32 %v304, %v701
      %v736 = vmul.f32 %v305, %v703
      %v737 = vmul.f32 %v306, %v705
      %738 = vst.msk [vmem:[%s273] sm:$0xff] %vm346, %v706
      %739 = vst.msk [vmem:[%s273 + $0x8] sm:$0xff] %vm346, %v707
      %740 = vst.msk [vmem:[%s273 + $0x10] sm:$0xff] %vm346, %v708
      %741 = vst.msk [vmem:[%s273 + $0x18] sm:$0xff] %vm346, %v709
      %742 = vst.msk [vmem:[%s273 + $0x20] sm:$0xff] %vm346, %v710
      %743 = vst.msk [vmem:[%s273 + $0x28] sm:$0xff] %vm346, %v711
      %744 = vst.msk [vmem:[%s273 + $0x30] sm:$0xff] %vm346, %v712
      %745 = vst.msk [vmem:[%s273 + $0x38] sm:$0xff] %vm346, %v713
      %746 = vst.msk [vmem:[%s273 + $0x40] sm:$0xff] %vm346, %v714
      %747 = vst.msk [vmem:[%s273 + $0x48] sm:$0xff] %vm346, %v715
      %748 = vst.msk [vmem:[%s273 + $0x50] sm:$0xff] %vm346, %v716
      %749 = vst.msk [vmem:[%s273 + $0x58] sm:$0xff] %vm346, %v717
      %750 = vst.msk [vmem:[%s273 + $0x60] sm:$0xff] %vm346, %v718
      %751 = vst.msk [vmem:[%s273 + $0x68] sm:$0xff] %vm346, %v719
      %752 = vst.msk [vmem:[%s273 + $0x70] sm:$0xff] %vm346, %v720
      %753 = vst.msk [vmem:[%s273 + $0x78] sm:$0xff] %vm346, %v721
      %754 = vst.msk [vmem:[%s273 + $0x80] sm:$0xff] %vm346, %v722
      %755 = vst.msk [vmem:[%s273 + $0x88] sm:$0xff] %vm346, %v723
      %756 = vst.msk [vmem:[%s273 + $0x90] sm:$0xff] %vm346, %v724
      %757 = vst.msk [vmem:[%s273 + $0x98] sm:$0xff] %vm346, %v725
      %758 = vst.msk [vmem:[%s273 + $0xa0] sm:$0xff] %vm346, %v726
      %759 = vst.msk [vmem:[%s273 + $0xa8] sm:$0xff] %vm346, %v727
      %760 = vst.msk [vmem:[%s273 + $0xb0] sm:$0xff] %vm346, %v728
      %761 = vst.msk [vmem:[%s273 + $0xb8] sm:$0xff] %vm346, %v729
      %762 = vst.msk [vmem:[%s273 + $0xc0] sm:$0xff] %vm346, %v730
      %763 = vst.msk [vmem:[%s273 + $0xc8] sm:$0xff] %vm346, %v731
      %764 = vst.msk [vmem:[%s273 + $0xd0] sm:$0xff] %vm346, %v732
      %765 = vst.msk [vmem:[%s273 + $0xd8] sm:$0xff] %vm346, %v733
      %766 = vst.msk [vmem:[%s273 + $0xe0] sm:$0xff] %vm346, %v734
      %767 = vst.msk [vmem:[%s273 + $0xe8] sm:$0xff] %vm346, %v735
      %768 = vst.msk [vmem:[%s273 + $0xf0] sm:$0xff] %vm346, %v736
      %769 = vst.msk [vmem:[%s273 + $0xf8] sm:$0xff] %vm346, %v737
      %s770 = smul.u32 32, %s21
      %p771 = scmp.lt.s32.totalorder %s20, 1
      %s772 = scalar_select %p771, %s20, 1
      %p773 = scmp.lt.s32.totalorder %s770, 31
      %s774 = scalar_select %p773, %s770, 31
      %s775 = smul.addr %s772, 32
      %s776 = sadd.s32 %s774, %s775
      %s777 = smul.addr %s776, 8
      %s778 = scalar_lea.vmem %s3, %s777
      %s779 = smul.u32 32, %s21
      %p780 = scmp.lt.s32.totalorder %s20, 1
      %s781 = scalar_select %p780, %s20, 1
      %p782 = scmp.lt.s32.totalorder %s779, 31
      %s783 = scalar_select %p782, %s779, 31
      %s784 = smul.addr %s781, 32
      %s785 = sadd.s32 %s783, %s784
      %s786 = smul.addr %s785, 8
      %s787 = scalar_lea.vmem %s4, %s786
      // Predicated region
      $region33: #{tpu_custom_call.1} parent=31 // pred_check
        %p788 = pneg %p123
      $region34: #{tpu_custom_call.1} parent=31 // pred_check_branch
        %790 = sbr.rel (%p788) target = $region36
      $region35: #{tpu_custom_call.1} parent=31 // pred_region
        %s791 = smul.u32 32, %s21
      $region36: #{tpu_custom_call.1} parent=31 // pred_fallthru
        _
      // Predicated region
      $region37: #{tpu_custom_call.1} parent=31 // pred_check
        %p792 = pneg %p151
      $region38: #{tpu_custom_call.1} parent=31 // pred_check_branch
        %794 = sbr.rel (%p792) target = $region40
      $region39: #{tpu_custom_call.1} parent=31 // pred_region
        %s795 = smul.u32 32, %s21
      $region40: #{tpu_custom_call.1} parent=31 // pred_fallthru
        _
    $region32: #{tpu_custom_call.1} parent=5 // pred_fallthru
      _
    %p796 = scmp.le.s32.totalorder 2, %s11
    // Predicated region
    $region41: #{tpu_custom_call.1} parent=5 // pred_check
      %p797 = pneg %p796
    $region42: #{tpu_custom_call.1} parent=5 // pred_check_branch
      %799 = sbr.rel (%p797) target = $region44
    $region43: #{tpu_custom_call.1} parent=5 // pred_region
      %s800 = ssub.s32 %s11, 2
      // Predicated region
      $region45: #{tpu_custom_call.1} parent=43 // pred_check
        %p801 = pneg %p129
      $region46: #{tpu_custom_call.1} parent=43 // pred_check_branch
        %803 = sbr.rel (%p801) target = $region48
      $region47: #{tpu_custom_call.1} parent=43 // pred_region
        %s804 = smul.u32 32, %s23
        %p805 = scmp.lt.s32.totalorder %s22, 1
        %s806 = scalar_select %p805, %s22, 1
        %p807 = scmp.lt.s32.totalorder %s804, 31
        %s808 = scalar_select %p807, %s804, 31
        %s809 = smul.addr %s806, 32
        %s810 = sadd.s32 %s808, %s809
        %s811 = smul.addr %s810, 8
        %s812 = scalar_lea.vmem %s3, %s811
      $region48: #{tpu_custom_call.1} parent=43 // pred_fallthru
        _
      // Predicated region
      $region49: #{tpu_custom_call.1} parent=43 // pred_check
        %p813 = pneg %p157
      $region50: #{tpu_custom_call.1} parent=43 // pred_check_branch
        %815 = sbr.rel (%p813) target = $region52
      $region51: #{tpu_custom_call.1} parent=43 // pred_region
        %s816 = smul.u32 32, %s23
        %p817 = scmp.lt.s32.totalorder %s22, 1
        %s818 = scalar_select %p817, %s22, 1
        %p819 = scmp.lt.s32.totalorder %s816, 31
        %s820 = scalar_select %p819, %s816, 31
        %s821 = smul.addr %s818, 32
        %s822 = sadd.s32 %s820, %s821
        %s823 = smul.addr %s822, 8
        %s824 = scalar_lea.vmem %s4, %s823
      $region52: #{tpu_custom_call.1} parent=43 // pred_fallthru
        _
    $region44: #{tpu_custom_call.1} parent=5 // pred_fallthru
      _
  $region6: #{tpu_custom_call.1} parent=0 // loop_footer
    %s15 = sadd.s32 1, %s11
  $region7: #{tpu_custom_call.1} parent=0 // loop_footer_branch
    %10 = sbr.rel target = $region3
  $region8: #{tpu_custom_call.1} parent=0 // loop_exit
    _

</llo_original>
